<compile_context>
chip_gen: v5e
topology: v5e:2x2
jax: 0.10.0
libtpu: 0.0.40
codegen_flags: <defaults>
</compile_context>

<pallas_src>
import jax
import jax.numpy as jnp
from jax import lax
from jax.experimental import pallas as pl
from jax.experimental.pallas import tpu as pltpu

_UNROLL = 8  # rows gathered per fori_loop step (partial unroll for bundle packing)


def _round_up(x, m):
    return ((x + m - 1) // m) * m


def _rowwise_dot(u_ref, g_ref, *, chunk=512):
    """Per-row dot of two (TN, K_pad) f32 refs -> lane-dense (1, TN) f32.

    Streams K in <=512-lane slabs (VPU multiply + ones-vector MXU reduce, f32
    accumulate) so no multi-MiB (TN, K_pad) temporary is materialized at large K.
    """
    tn, k_pad = u_ref.shape
    acc = None
    c0 = 0
    while c0 < k_pad:
        c = min(chunk, k_pad - c0)
        prod = u_ref[:, pl.ds(c0, c)] * g_ref[:, pl.ds(c0, c)]            # (TN, c)
        ones_v = jnp.ones((1, c), jnp.float32)
        part = lax.dot_general(ones_v, prod,
                               dimension_numbers=(((1,), (1,)), ((), ())),
                               preferred_element_type=jnp.float32)        # (1, TN)
        acc = part if acc is None else acc + part
        c0 += c
    return acc


# ----------------------------------------------------------------------------
# Path A: tables resident in VMEM (small / medium factor matrices).
# ----------------------------------------------------------------------------
def als_vmem_kernel(uidx_ref, gidx_ref, user_ref, goods_ref, out_ref, ubuf, gbuf):
    # uidx_ref / gidx_ref : (N_pad,) int32 in SMEM (scalar prefetch)
    # user_ref            : (U_pad, K_pad) f32, VMEM-resident (constant block)
    # goods_ref           : (G_pad, K_pad) f32, VMEM-resident goods rows
    # out_ref             : (1, 1, TN) f32 lane-dense output block
    # ubuf / gbuf         : (TN, K_pad) f32 gather scratch
    tn, _ = ubuf.shape
    base = pl.program_id(0) * tn

    def gather_block(b, carry):
        r0 = b * _UNROLL
        for j in range(_UNROLL):                       # static partial unroll
            r = r0 + j
            u = uidx_ref[base + r]
            g = gidx_ref[base + r]
            ubuf[pl.ds(r, 1), :] = user_ref[pl.ds(u, 1), :]
            gbuf[pl.ds(r, 1), :] = goods_ref[pl.ds(g, 1), :]
        return carry

    lax.fori_loop(0, tn // _UNROLL, gather_block, 0)

    res = _rowwise_dot(ubuf, gbuf)                     # (1, TN)
    out_ref[...] = res.reshape(1, 1, tn)


# ----------------------------------------------------------------------------
# Path B: tables stay in HBM, rows are DMA-gathered per tile.
# ----------------------------------------------------------------------------
def als_hbm_kernel(uidx_ref, gidx_ref, user_hbm, goods_hbm, out_ref,
                   ubuf, gbuf, sems):
    # user_hbm / goods_hbm : (U, K_pad) / (G, K_pad) f32 in HBM (no auto-DMA)
    # ubuf / gbuf          : (TN, K_pad) f32 VMEM gather buffers
    # sems                 : DMA semaphores, shape (2,)  [0]=user, [1]=goods
    tn, _ = ubuf.shape
    base = pl.program_id(0) * tn

    # Issue all 2*TN row-gather DMAs up front so they overlap with each other.
    def issue_block(b, carry):
        r0 = b * _UNROLL
        for j in range(_UNROLL):                       # static partial unroll
            r = r0 + j
            u = uidx_ref[base + r]
            g = gidx_ref[base + r]
            pltpu.make_async_copy(user_hbm.at[pl.ds(u, 1)],
                                  ubuf.at[pl.ds(r, 1)], sems.at[0]).start()
            pltpu.make_async_copy(goods_hbm.at[pl.ds(g, 1)],
                                  gbuf.at[pl.ds(r, 1)], sems.at[1]).start()
        return carry

    lax.fori_loop(0, tn // _UNROLL, issue_block, 0)

    # Aggregated drain: DMA semaphores count bytes, so one wait whose descriptor
    # covers the whole (TN, K_pad) buffer consumes exactly the TN row copies that
    # were issued on that semaphore.  The descriptor is built from the VMEM buffer
    # (never from user_hbm rows), so it is valid even when U or G < TN.
    pltpu.make_async_copy(ubuf, ubuf, sems.at[0]).wait()
    pltpu.make_async_copy(gbuf, gbuf, sems.at[1]).wait()

    res = _rowwise_dot(ubuf, gbuf)                     # (1, TN)
    out_ref[...] = res.reshape(1, 1, tn)


# ----------------------------------------------------------------------------
# Wrapper / dispatcher.
# ----------------------------------------------------------------------------
def als_forward(location, user_matrix, goods_matrix, *, tn=256,
                vmem_budget_bytes=24 * 1024 * 1024):
    """location: (N, 2) int; returns (N, 1) f32 (matches the torch forward).

    tn: rows per grid step (multiple of 128).  256 suits v6e/v7x; the wrapper
    shrinks it to cover small N.  Tables + scratch within `vmem_budget_bytes`
    take the VMEM-resident path; otherwise rows are DMA-gathered from HBM.
    """
    n = location.shape[0]
    u_num, k = user_matrix.shape
    k2, g_num = goods_matrix.shape
    assert k == k2

    # Row tile: multiple of 128 (lane-dense output), no bigger than needed.
    tn = max(128, min(tn, _round_up(n, 128)))
    assert tn % 128 == 0

    # Lane-align K (zeros don't change the dot product).
    k_pad = _round_up(k, 128)

    # TODO(synk): in production, store goods in (G, K) row-major layout upstream
    # (and cache the padded tables across calls) instead of transposing/padding
    # on every forward -- on v5e the per-call transpose traffic is significant.
    goods_rows = goods_matrix.T                          # (G, K)

    u_pad = _round_up(u_num, 8)
    g_pad = _round_up(g_num, 8)
    table_bytes = (u_pad + g_pad) * k_pad * 4
    scratch_bytes = 2 * tn * k_pad * 4
    use_vmem = (2 * table_bytes + scratch_bytes) <= vmem_budget_bytes

    if use_vmem:
        user_p = jnp.pad(user_matrix, ((0, u_pad - u_num), (0, k_pad - k)))
        goods_p = jnp.pad(goods_rows, ((0, g_pad - g_num), (0, k_pad - k)))
    else:
        if k_pad != k:
            user_p = jnp.pad(user_matrix, ((0, 0), (0, k_pad - k)))
            goods_p = jnp.pad(goods_rows, ((0, 0), (0, k_pad - k)))
        else:
            user_p, goods_p = user_matrix, goods_rows

    # Indices: clamp (torch would raise on OOB; an unchecked OOB DMA would fault
    # the device), pad N to a tile multiple (padded rows gather row 0, dropped).
    uidx = jnp.clip(location[:, 0].astype(jnp.int32), 0, u_num - 1)
    gidx = jnp.clip(location[:, 1].astype(jnp.int32), 0, g_num - 1)
    num_tiles = -(-n // tn)
    if num_tiles > 1 and num_tiles % 2 == 1:
        num_tiles += 1                                   # v7x: balance both TensorCores
    n_pad = num_tiles * tn
    if n_pad != n:
        uidx = jnp.pad(uidx, (0, n_pad - n))
        gidx = jnp.pad(gidx, (0, n_pad - n))

    out_spec = pl.BlockSpec((1, 1, tn), lambda i, uref, gref: (i, 0, 0))
    compiler_params = pltpu.CompilerParams(
        dimension_semantics=("parallel",),               # tiles are independent
        vmem_limit_bytes=32 * 1024 * 1024)

    if use_vmem:
        grid_spec = pltpu.PrefetchScalarGridSpec(
            num_scalar_prefetch=2,                       # uidx, gidx -> SMEM
            grid=(num_tiles,),
            in_specs=[
                pl.BlockSpec((u_pad, k_pad), lambda i, uref, gref: (0, 0)),
                pl.BlockSpec((g_pad, k_pad), lambda i, uref, gref: (0, 0)),
            ],
            out_specs=out_spec,
            scratch_shapes=[
                pltpu.VMEM((tn, k_pad), jnp.float32),
                pltpu.VMEM((tn, k_pad), jnp.float32),
            ],
        )
        kernel = als_vmem_kernel
    else:
        grid_spec = pltpu.PrefetchScalarGridSpec(
            num_scalar_prefetch=2,
            grid=(num_tiles,),
            in_specs=[
                pl.BlockSpec(memory_space=pl.ANY),       # user table stays in HBM
                pl.BlockSpec(memory_space=pl.ANY),       # goods rows stay in HBM
            ],
            out_specs=out_spec,
            scratch_shapes=[
                pltpu.VMEM((tn, k_pad), jnp.float32),
                pltpu.VMEM((tn, k_pad), jnp.float32),
                pltpu.SemaphoreType.DMA((2,)),
            ],
        )
        kernel = als_hbm_kernel

    out_tiles = pl.pallas_call(
        kernel,
        out_shape=jax.ShapeDtypeStruct((num_tiles, 1, tn), jnp.float32),
        grid_spec=grid_spec,
        compiler_params=compiler_params,
    )(uidx, gidx, user_p, goods_p)

    # TODO(synk): optional wrapper-side dedup/sort of (user, goods) pairs would
    # further cut HBM gather traffic for highly repetitive ALS lookups.
    return out_tiles.reshape(-1)[:n].reshape(n, 1)


if __name__ == "__main__":
    key = jax.random.PRNGKey(0)
    k_user, k_goods, k_loc_u, k_loc_g = jax.random.split(key, 4)

    user_num, goods_num, k_dim = 16, 32, 32
    n_loc = 8  # number of (user, goods) lookups

    # Deterministic "torch.rand"-style uniform [0, 1) init.
    # TODO(synk): loading ./weights_matrix/*.npy and requires_grad/training state
    # from the original module are out of scope for a forward-pass kernel.
    user_matrix = jax.random.uniform(k_user, (user_num, k_dim), jnp.float32)
    goods_matrix = jax.random.uniform(k_goods, (k_dim, goods_num), jnp.float32)

    loc_u = jax.random.randint(k_loc_u, (n_loc, 1), 0, user_num, jnp.int32)
    loc_g = jax.random.randint(k_loc_g, (n_loc, 1), 0, goods_num, jnp.int32)
    location = jnp.concatenate([loc_u, loc_g], axis=1)   # (N, 2) int32

    # Pure-JAX reference of the PyTorch forward.
    ref = jnp.sum(user_matrix[location[:, 0], :] *
                  goods_matrix[:, location[:, 1]].T,
                  axis=-1, keepdims=True)

    # 1) VMEM-resident fast path (tables fit on-chip -- the default dispatch here).
    out_vmem = jax.block_until_ready(als_forward(location, user_matrix, goods_matrix))
    assert out_vmem.shape == (n_loc, 1)
    assert jnp.allclose(out_vmem, ref, atol=1e-5, rtol=1e-5)

    # 2) HBM row-gather path (forced) -- also exercises the aggregated-wait DMA kernel.
    out_hbm = jax.block_until_ready(
        als_forward(location, user_matrix, goods_matrix, vmem_budget_bytes=0))
    assert out_hbm.shape == (n_loc, 1)
    assert jnp.allclose(out_hbm, ref, atol=1e-5, rtol=1e-5)

    print("KERNEL_OK")
</pallas_src>

<mosaic_0001>
module attributes {stable_mosaic.version = 11 : i64} {
  func.func @als_vmem_kernel(%arg0: i32, %arg1: memref<128xi32, #tpu.memory_space<smem>>, %arg2: memref<128xi32, #tpu.memory_space<smem>>, %arg3: memref<16x128xf32, #tpu.memory_space<vmem>>, %arg4: memref<32x128xf32, #tpu.memory_space<vmem>>, %arg5: memref<1x1x128xf32, #tpu.memory_space<vmem>>, %arg6: memref<128x128xf32, #tpu.memory_space<vmem>>, %arg7: memref<128x128xf32, #tpu.memory_space<vmem>>) attributes {dimension_semantics = [#tpu.dimension_semantics<parallel>], iteration_bounds = array<i64: 1>, scalar_prefetch = 2 : i64, scratch_operands = 2 : i64, tpu.core_type = #tpu.core_type<tc>, window_params = [{pipeline_mode = #tpu.pipeline_mode<synchronous>, transform_indices = @transform_0, window_bounds = array<i64: 16, 128>}, {pipeline_mode = #tpu.pipeline_mode<synchronous>, transform_indices = @transform_1, window_bounds = array<i64: 32, 128>}, {transform_indices = @transform_2, window_bounds = array<i64: 1, 1, 128>}]} {
    %c128_i32 = arith.constant 128 : i32
    %0 = arith.muli %arg0, %c128_i32 : i32
    %c0_i32 = arith.constant 0 : i32
    %c16_i32 = arith.constant 16 : i32
    %1 = arith.addi %c0_i32, %c16_i32 : i32
    %c1_i32 = arith.constant 1 : i32
    scf.for %arg8 = %c0_i32 to %1 step %c1_i32  : i32 {
      %c8_i32 = arith.constant 8 : i32
      %9 = arith.muli %arg8, %c8_i32 : i32
      %c0_i32_8 = arith.constant 0 : i32
      %10 = arith.addi %9, %c0_i32_8 : i32
      %11 = arith.addi %0, %10 : i32
      %12 = arith.index_cast %11 : i32 to index
      %13 = memref.load %arg1[%12] : memref<128xi32, #tpu.memory_space<smem>>
      %14 = arith.addi %0, %10 : i32
      %15 = arith.index_cast %14 : i32 to index
      %16 = memref.load %arg2[%15] : memref<128xi32, #tpu.memory_space<smem>>
      %17 = arith.index_cast %13 : i32 to index
      %c0_9 = arith.constant 0 : index
      %18 = vector.load %arg3[%17, %c0_9] : memref<16x128xf32, #tpu.memory_space<vmem>>, vector<1x128xf32>
      %19 = arith.index_cast %10 : i32 to index
      %c0_10 = arith.constant 0 : index
      %20 = vector.load %arg6[%19, %c0_10] : memref<128x128xf32, #tpu.memory_space<vmem>>, vector<1x128xf32>
      tpu.vector_store %arg6[%19, %c0_10], %18 {strides = array<i32>} : memref<128x128xf32, #tpu.memory_space<vmem>>, vector<1x128xf32>,
      %21 = arith.index_cast %16 : i32 to index
      %c0_11 = arith.constant 0 : index
      %22 = vector.load %arg4[%21, %c0_11] : memref<32x128xf32, #tpu.memory_space<vmem>>, vector<1x128xf32>
      %23 = arith.index_cast %10 : i32 to index
      %c0_12 = arith.constant 0 : index
      %24 = vector.load %arg7[%23, %c0_12] : memref<128x128xf32, #tpu.memory_space<vmem>>, vector<1x128xf32>
      tpu.vector_store %arg7[%23, %c0_12], %22 {strides = array<i32>} : memref<128x128xf32, #tpu.memory_space<vmem>>, vector<1x128xf32>,
      %c1_i32_13 = arith.constant 1 : i32
      %25 = arith.addi %9, %c1_i32_13 : i32
      %26 = arith.addi %0, %25 : i32
      %27 = arith.index_cast %26 : i32 to index
      %28 = memref.load %arg1[%27] : memref<128xi32, #tpu.memory_space<smem>>
      %29 = arith.addi %0, %25 : i32
      %30 = arith.index_cast %29 : i32 to index
      %31 = memref.load %arg2[%30] : memref<128xi32, #tpu.memory_space<smem>>
      %32 = arith.index_cast %28 : i32 to index
      %c0_14 = arith.constant 0 : index
      %33 = vector.load %arg3[%32, %c0_14] : memref<16x128xf32, #tpu.memory_space<vmem>>, vector<1x128xf32>
      %34 = arith.index_cast %25 : i32 to index
      %c0_15 = arith.constant 0 : index
      %35 = vector.load %arg6[%34, %c0_15] : memref<128x128xf32, #tpu.memory_space<vmem>>, vector<1x128xf32>
      tpu.vector_store %arg6[%34, %c0_15], %33 {strides = array<i32>} : memref<128x128xf32, #tpu.memory_space<vmem>>, vector<1x128xf32>,
      %36 = arith.index_cast %31 : i32 to index
      %c0_16 = arith.constant 0 : index
      %37 = vector.load %arg4[%36, %c0_16] : memref<32x128xf32, #tpu.memory_space<vmem>>, vector<1x128xf32>
      %38 = arith.index_cast %25 : i32 to index
      %c0_17 = arith.constant 0 : index
      %39 = vector.load %arg7[%38, %c0_17] : memref<128x128xf32, #tpu.memory_space<vmem>>, vector<1x128xf32>
      tpu.vector_store %arg7[%38, %c0_17], %37 {strides = array<i32>} : memref<128x128xf32, #tpu.memory_space<vmem>>, vector<1x128xf32>,
      %c2_i32 = arith.constant 2 : i32
      %40 = arith.addi %9, %c2_i32 : i32
      %41 = arith.addi %0, %40 : i32
      %42 = arith.index_cast %41 : i32 to index
      %43 = memref.load %arg1[%42] : memref<128xi32, #tpu.memory_space<smem>>
      %44 = arith.addi %0, %40 : i32
      %45 = arith.index_cast %44 : i32 to index
      %46 = memref.load %arg2[%45] : memref<128xi32, #tpu.memory_space<smem>>
      %47 = arith.index_cast %43 : i32 to index
      %c0_18 = arith.constant 0 : index
      %48 = vector.load %arg3[%47, %c0_18] : memref<16x128xf32, #tpu.memory_space<vmem>>, vector<1x128xf32>
      %49 = arith.index_cast %40 : i32 to index
      %c0_19 = arith.constant 0 : index
      %50 = vector.load %arg6[%49, %c0_19] : memref<128x128xf32, #tpu.memory_space<vmem>>, vector<1x128xf32>
      tpu.vector_store %arg6[%49, %c0_19], %48 {strides = array<i32>} : memref<128x128xf32, #tpu.memory_space<vmem>>, vector<1x128xf32>,
      %51 = arith.index_cast %46 : i32 to index
      %c0_20 = arith.constant 0 : index
      %52 = vector.load %arg4[%51, %c0_20] : memref<32x128xf32, #tpu.memory_space<vmem>>, vector<1x128xf32>
      %53 = arith.index_cast %40 : i32 to index
      %c0_21 = arith.constant 0 : index
      %54 = vector.load %arg7[%53, %c0_21] : memref<128x128xf32, #tpu.memory_space<vmem>>, vector<1x128xf32>
      tpu.vector_store %arg7[%53, %c0_21], %52 {strides = array<i32>} : memref<128x128xf32, #tpu.memory_space<vmem>>, vector<1x128xf32>,
      %c3_i32 = arith.constant 3 : i32
      %55 = arith.addi %9, %c3_i32 : i32
      %56 = arith.addi %0, %55 : i32
      %57 = arith.index_cast %56 : i32 to index
      %58 = memref.load %arg1[%57] : memref<128xi32, #tpu.memory_space<smem>>
      %59 = arith.addi %0, %55 : i32
      %60 = arith.index_cast %59 : i32 to index
      %61 = memref.load %arg2[%60] : memref<128xi32, #tpu.memory_space<smem>>
      %62 = arith.index_cast %58 : i32 to index
      %c0_22 = arith.constant 0 : index
      %63 = vector.load %arg3[%62, %c0_22] : memref<16x128xf32, #tpu.memory_space<vmem>>, vector<1x128xf32>
      %64 = arith.index_cast %55 : i32 to index
      %c0_23 = arith.constant 0 : index
      %65 = vector.load %arg6[%64, %c0_23] : memref<128x128xf32, #tpu.memory_space<vmem>>, vector<1x128xf32>
      tpu.vector_store %arg6[%64, %c0_23], %63 {strides = array<i32>} : memref<128x128xf32, #tpu.memory_space<vmem>>, vector<1x128xf32>,
      %66 = arith.index_cast %61 : i32 to index
      %c0_24 = arith.constant 0 : index
      %67 = vector.load %arg4[%66, %c0_24] : memref<32x128xf32, #tpu.memory_space<vmem>>, vector<1x128xf32>
      %68 = arith.index_cast %55 : i32 to index
      %c0_25 = arith.constant 0 : index
      %69 = vector.load %arg7[%68, %c0_25] : memref<128x128xf32, #tpu.memory_space<vmem>>, vector<1x128xf32>
      tpu.vector_store %arg7[%68, %c0_25], %67 {strides = array<i32>} : memref<128x128xf32, #tpu.memory_space<vmem>>, vector<1x128xf32>,
      %c4_i32 = arith.constant 4 : i32
      %70 = arith.addi %9, %c4_i32 : i32
      %71 = arith.addi %0, %70 : i32
      %72 = arith.index_cast %71 : i32 to index
      %73 = memref.load %arg1[%72] : memref<128xi32, #tpu.memory_space<smem>>
      %74 = arith.addi %0, %70 : i32
      %75 = arith.index_cast %74 : i32 to index
      %76 = memref.load %arg2[%75] : memref<128xi32, #tpu.memory_space<smem>>
      %77 = arith.index_cast %73 : i32 to index
      %c0_26 = arith.constant 0 : index
      %78 = vector.load %arg3[%77, %c0_26] : memref<16x128xf32, #tpu.memory_space<vmem>>, vector<1x128xf32>
      %79 = arith.index_cast %70 : i32 to index
      %c0_27 = arith.constant 0 : index
      %80 = vector.load %arg6[%79, %c0_27] : memref<128x128xf32, #tpu.memory_space<vmem>>, vector<1x128xf32>
      tpu.vector_store %arg6[%79, %c0_27], %78 {strides = array<i32>} : memref<128x128xf32, #tpu.memory_space<vmem>>, vector<1x128xf32>,
      %81 = arith.index_cast %76 : i32 to index
      %c0_28 = arith.constant 0 : index
      %82 = vector.load %arg4[%81, %c0_28] : memref<32x128xf32, #tpu.memory_space<vmem>>, vector<1x128xf32>
      %83 = arith.index_cast %70 : i32 to index
      %c0_29 = arith.constant 0 : index
      %84 = vector.load %arg7[%83, %c0_29] : memref<128x128xf32, #tpu.memory_space<vmem>>, vector<1x128xf32>
      tpu.vector_store %arg7[%83, %c0_29], %82 {strides = array<i32>} : memref<128x128xf32, #tpu.memory_space<vmem>>, vector<1x128xf32>,
      %c5_i32 = arith.constant 5 : i32
      %85 = arith.addi %9, %c5_i32 : i32
      %86 = arith.addi %0, %85 : i32
      %87 = arith.index_cast %86 : i32 to index
      %88 = memref.load %arg1[%87] : memref<128xi32, #tpu.memory_space<smem>>
      %89 = arith.addi %0, %85 : i32
      %90 = arith.index_cast %89 : i32 to index
      %91 = memref.load %arg2[%90] : memref<128xi32, #tpu.memory_space<smem>>
      %92 = arith.index_cast %88 : i32 to index
      %c0_30 = arith.constant 0 : index
      %93 = vector.load %arg3[%92, %c0_30] : memref<16x128xf32, #tpu.memory_space<vmem>>, vector<1x128xf32>
      %94 = arith.index_cast %85 : i32 to index
      %c0_31 = arith.constant 0 : index
      %95 = vector.load %arg6[%94, %c0_31] : memref<128x128xf32, #tpu.memory_space<vmem>>, vector<1x128xf32>
      tpu.vector_store %arg6[%94, %c0_31], %93 {strides = array<i32>} : memref<128x128xf32, #tpu.memory_space<vmem>>, vector<1x128xf32>,
      %96 = arith.index_cast %91 : i32 to index
      %c0_32 = arith.constant 0 : index
      %97 = vector.load %arg4[%96, %c0_32] : memref<32x128xf32, #tpu.memory_space<vmem>>, vector<1x128xf32>
      %98 = arith.index_cast %85 : i32 to index
      %c0_33 = arith.constant 0 : index
      %99 = vector.load %arg7[%98, %c0_33] : memref<128x128xf32, #tpu.memory_space<vmem>>, vector<1x128xf32>
      tpu.vector_store %arg7[%98, %c0_33], %97 {strides = array<i32>} : memref<128x128xf32, #tpu.memory_space<vmem>>, vector<1x128xf32>,
      %c6_i32 = arith.constant 6 : i32
      %100 = arith.addi %9, %c6_i32 : i32
      %101 = arith.addi %0, %100 : i32
      %102 = arith.index_cast %101 : i32 to index
      %103 = memref.load %arg1[%102] : memref<128xi32, #tpu.memory_space<smem>>
      %104 = arith.addi %0, %100 : i32
      %105 = arith.index_cast %104 : i32 to index
      %106 = memref.load %arg2[%105] : memref<128xi32, #tpu.memory_space<smem>>
      %107 = arith.index_cast %103 : i32 to index
      %c0_34 = arith.constant 0 : index
      %108 = vector.load %arg3[%107, %c0_34] : memref<16x128xf32, #tpu.memory_space<vmem>>, vector<1x128xf32>
      %109 = arith.index_cast %100 : i32 to index
      %c0_35 = arith.constant 0 : index
      %110 = vector.load %arg6[%109, %c0_35] : memref<128x128xf32, #tpu.memory_space<vmem>>, vector<1x128xf32>
      tpu.vector_store %arg6[%109, %c0_35], %108 {strides = array<i32>} : memref<128x128xf32, #tpu.memory_space<vmem>>, vector<1x128xf32>,
      %111 = arith.index_cast %106 : i32 to index
      %c0_36 = arith.constant 0 : index
      %112 = vector.load %arg4[%111, %c0_36] : memref<32x128xf32, #tpu.memory_space<vmem>>, vector<1x128xf32>
      %113 = arith.index_cast %100 : i32 to index
      %c0_37 = arith.constant 0 : index
      %114 = vector.load %arg7[%113, %c0_37] : memref<128x128xf32, #tpu.memory_space<vmem>>, vector<1x128xf32>
      tpu.vector_store %arg7[%113, %c0_37], %112 {strides = array<i32>} : memref<128x128xf32, #tpu.memory_space<vmem>>, vector<1x128xf32>,
      %c7_i32 = arith.constant 7 : i32
      %115 = arith.addi %9, %c7_i32 : i32
      %116 = arith.addi %0, %115 : i32
      %117 = arith.index_cast %116 : i32 to index
      %118 = memref.load %arg1[%117] : memref<128xi32, #tpu.memory_space<smem>>
      %119 = arith.addi %0, %115 : i32
      %120 = arith.index_cast %119 : i32 to index
      %121 = memref.load %arg2[%120] : memref<128xi32, #tpu.memory_space<smem>>
      %122 = arith.index_cast %118 : i32 to index
      %c0_38 = arith.constant 0 : index
      %123 = vector.load %arg3[%122, %c0_38] : memref<16x128xf32, #tpu.memory_space<vmem>>, vector<1x128xf32>
      %124 = arith.index_cast %115 : i32 to index
      %c0_39 = arith.constant 0 : index
      %125 = vector.load %arg6[%124, %c0_39] : memref<128x128xf32, #tpu.memory_space<vmem>>, vector<1x128xf32>
      tpu.vector_store %arg6[%124, %c0_39], %123 {strides = array<i32>} : memref<128x128xf32, #tpu.memory_space<vmem>>, vector<1x128xf32>,
      %126 = arith.index_cast %121 : i32 to index
      %c0_40 = arith.constant 0 : index
      %127 = vector.load %arg4[%126, %c0_40] : memref<32x128xf32, #tpu.memory_space<vmem>>, vector<1x128xf32>
      %128 = arith.index_cast %115 : i32 to index
      %c0_41 = arith.constant 0 : index
      %129 = vector.load %arg7[%128, %c0_41] : memref<128x128xf32, #tpu.memory_space<vmem>>, vector<1x128xf32>
      tpu.vector_store %arg7[%128, %c0_41], %127 {strides = array<i32>} : memref<128x128xf32, #tpu.memory_space<vmem>>, vector<1x128xf32>,
    }
    %c16_i32_0 = arith.constant 16 : i32
    %c0 = arith.constant 0 : index
    %c0_1 = arith.constant 0 : index
    %2 = vector.load %arg6[%c0, %c0_1] : memref<128x128xf32, #tpu.memory_space<vmem>>, vector<128x128xf32>
    %c0_2 = arith.constant 0 : index
    %c0_3 = arith.constant 0 : index
    %3 = vector.load %arg7[%c0_2, %c0_3] : memref<128x128xf32, #tpu.memory_space<vmem>>, vector<128x128xf32>
    %4 = arith.mulf %2, %3 : vector<128x128xf32>
    %cst = arith.constant 1.000000e+00 : f32
    %5 = vector.broadcast %cst : f32 to vector<1x128xf32>
    %cst_4 = arith.constant dense<0.000000e+00> : vector<1x128xf32>
    %6 = tpu.matmul %5, %4, %cst_4 {dimension_numbers = #tpu.dot_dimension_numbers<[1], [1], [0], [0], [0, 0, 1, 0], [], []>} : vector<1x128xf32>, vector<128x128xf32>, vector<1x128xf32> -> vector<1x128xf32>
    %7 = vector.shape_cast %6 : vector<1x128xf32> to vector<1x1x128xf32>
    %c0_5 = arith.constant 0 : index
    %c0_6 = arith.constant 0 : index
    %c0_7 = arith.constant 0 : index
    %8 = vector.load %arg5[%c0_5, %c0_6, %c0_7] : memref<1x1x128xf32, #tpu.memory_space<vmem>>, vector<1x1x128xf32>
    tpu.vector_store %arg5[%c0_5, %c0_6, %c0_7], %7 {strides = array<i32>} : memref<1x1x128xf32, #tpu.memory_space<vmem>>, vector<1x1x128xf32>,
    return
  }
  func.func @transform_0(%arg0: i32, %arg1: memref<128xi32, #tpu.memory_space<smem>>, %arg2: memref<128xi32, #tpu.memory_space<smem>>) -> (i32, i32) {
    %c0_i32 = arith.constant 0 : i32
    %c0_i32_0 = arith.constant 0 : i32
    %c0_i32_1 = arith.constant 0 : i32
    return %c0_i32, %c0_i32_0 : i32, i32
  }
  func.func @transform_1(%arg0: i32, %arg1: memref<128xi32, #tpu.memory_space<smem>>, %arg2: memref<128xi32, #tpu.memory_space<smem>>) -> (i32, i32) {
    %c0_i32 = arith.constant 0 : i32
    %c0_i32_0 = arith.constant 0 : i32
    %c0_i32_1 = arith.constant 0 : i32
    return %c0_i32, %c0_i32_0 : i32, i32
  }
  func.func @transform_2(%arg0: i32, %arg1: memref<128xi32, #tpu.memory_space<smem>>, %arg2: memref<128xi32, #tpu.memory_space<smem>>) -> (i32, i32, i32) {
    %c0_i32 = arith.constant 0 : i32
    %c0_i32_0 = arith.constant 0 : i32
    %c0_i32_1 = arith.constant 0 : i32
    return %arg0, %c0_i32, %c0_i32_0 : i32, i32, i32
  }
}

</mosaic_0001>

<llo_original>
// kernel: tpu_custom_call.1
$region0: #{tpu_custom_call.1}
  #allocation0 [shape = 'u32[]', space=smem, size = 0x4, offset = 0x4, fixed_abs, tag = 'smem constant byte address 0x4 - core index']
  #allocation1 [shape = 'u32[72,128]{1,0:T(1,128)}', space=vmem, size = 0x9000, scoped, tag = 'internal scratch']
  #allocation2 [shape = 'f32[128,128]{1,0:T(8,128)}', space=vmem, size = 0x10000, scoped, tag = 'scratch operand']
  #allocation3 [shape = 'f32[128,128]{1,0:T(8,128)}', space=vmem, size = 0x10000, scoped, tag = 'scratch operand']
  #allocation4 [shape = 's32[1]{0}', space=sflag, size = 0x4, scoped, tag = 'scoped memory for tpu_custom_call.1']
  #allocation5 [shape = 'u8[512]{0}', space=smem, size = 0x200, scoped, tag = 'prefetched SMEM operand 0']
  #allocation6 [shape = 'u8[512]{0}', space=smem, size = 0x200, scoped, tag = 'prefetched SMEM operand 1']
  %s0 = inlined_call_operand.hbm [shape: s32[128], index: 0, kind: input, shape index: {}]
  %s1 = inlined_call_operand.hbm [shape: s32[128], index: 1, kind: input, shape index: {}]
  %s2 = inlined_call_operand.hbm [shape: f32[16,128], index: 2, kind: input, shape index: {}]
  %s3 = inlined_call_operand.hbm [shape: f32[32,128], index: 3, kind: input, shape index: {}]
  %s4 = inlined_call_operand.hbm [shape: f32[1,1,128], index: 4, kind: output, shape index: {}]
  %s5 = sld [smem:[#allocation0]]
  $region33: #{tpu_custom_call.1} parent=0
    _
  %s7 = ssub.s32 1, %s5
  %s8 = scalar_select 0, %s7, %s5
  %s10 = sshll.u32 %s0, 4
  %s11 = int_to_ptr.hbm [resolvable:$true] %s10
  %13 = dma.hbm_to_smem %s11, 16, [#allocation5], [#allocation4]
  %s15 = sshll.u32 %s1, 4
  %s16 = int_to_ptr.hbm [resolvable:$true] %s15
  %18 = dma.hbm_to_smem %s16, 16, [#allocation6], [#allocation4]
  %20 = dma.done [#allocation4], 32
  %21 = sfence
  $region1: #{tpu_custom_call.1} parent=0
    #allocation7 [shape = 'u8[8192]{0}', space=vmem, size = 0x2000, scoped, tag = 'input window, operand 2, single buffered']
    #allocation8 [shape = 's32[1]{0}', space=sflag, size = 0x4, scoped, tag = 'scoped memory for tpu_custom_call.1']
    #allocation9 [shape = 's32[1]{0}', space=sflag, size = 0x4, scoped, tag = 'scoped memory for tpu_custom_call.1']
    #allocation10 [shape = 'u8[16384]{0}', space=vmem, size = 0x4000, scoped, tag = 'input window, operand 3, single buffered']
    #allocation11 [shape = 's32[1]{0}', space=sflag, size = 0x4, scoped, tag = 'scoped memory for tpu_custom_call.1']
    #allocation12 [shape = 'u8[512]{0}', space=vmem, size = 0x400, scoped, tag = 'output window, operand 0, single buffered']
    %22 = vsyncpa [#allocation8], 0
    %23 = vsyncpa [#allocation11], 0
    %24 = vsyncpa [#allocation9], 0
    // Predicated region
    $region2: #{tpu_custom_call.1} parent=1 // pred_check
      _
    $region3: #{tpu_custom_call.1} parent=1 // pred_check_branch
      %26 = sbr.rel (0) target = $region5
    $region4: #{tpu_custom_call.1} parent=1 // pred_region
      %28 = vsyncadd [#allocation8], 0
      %s29 = sshll.u32 %s2, 4
      %s30 = int_to_ptr.hbm [resolvable:$true] %s29
      %s31 = sshll.u32 [#allocation7], 4
      %s32 = int_to_ptr.vmem [resolvable:$true] %s31
      %37 = dma.hbm_to_vmem [thread:$0]  %s30, 256, %s32, [#allocation8], 128, 128, 8
    $region5: #{tpu_custom_call.1} parent=1 // pred_fallthru
      _
    // Predicated region
    $region6: #{tpu_custom_call.1} parent=1 // pred_check
      _
    $region7: #{tpu_custom_call.1} parent=1 // pred_check_branch
      %39 = sbr.rel (0) target = $region9
    $region8: #{tpu_custom_call.1} parent=1 // pred_region
      %41 = vsyncadd [#allocation11], 0
      %s42 = sshll.u32 %s3, 4
      %s43 = int_to_ptr.hbm [resolvable:$true] %s42
      %s44 = sshll.u32 [#allocation10], 4
      %s45 = int_to_ptr.vmem [resolvable:$true] %s44
      %50 = dma.hbm_to_vmem [thread:$0]  %s43, 512, %s45, [#allocation11], 128, 128, 8
    $region9: #{tpu_custom_call.1} parent=1 // pred_fallthru
      _
    // Predicated region
    $region10: #{tpu_custom_call.1} parent=1 // pred_check
      _
    $region11: #{tpu_custom_call.1} parent=1 // pred_check_branch
      %52 = sbr.rel (0) target = $region13
    $region12: #{tpu_custom_call.1} parent=1 // pred_region
      %54 = dma.done [#allocation8], 256
    $region13: #{tpu_custom_call.1} parent=1 // pred_fallthru
      _
    // Predicated region
    $region14: #{tpu_custom_call.1} parent=1 // pred_check
      _
    $region15: #{tpu_custom_call.1} parent=1 // pred_check_branch
      %56 = sbr.rel (0) target = $region17
    $region16: #{tpu_custom_call.1} parent=1 // pred_region
      %58 = dma.done [#allocation11], 512
    $region17: #{tpu_custom_call.1} parent=1 // pred_fallthru
      _
    %s59 = smul.u32 0, 128
    loop: start=0, step=1, limit=16
    $region18: #{tpu_custom_call.1} parent=1 // loop_pre_header
      _
    $region19: #{tpu_custom_call.1} parent=1 // loop_header
      %s61 = sphi 0, %s65
      %p62 = scmp.ge.s32.totalorder %s61, 16
    $region20: #{tpu_custom_call.1} parent=1 // loop_header_branch
      %64 = sbr.rel (%p62) target = $region24
    $region21: #{tpu_custom_call.1} parent=1 // loop_body
      %s66 = smul.u32 %s61, 8
      %s67 = sadd.s32 %s59, %s66
      %s68 = sld [smem:[#allocation5 + %s67]]
      %s69 = sld [smem:[#allocation6 + %s67]]
      %s70 = scalar_lea.vmem [#allocation7], %s68
      %v71 = vld [vmem:[%s70] sm:$0x1]
      %s72 = scalar_lea.vmem [#allocation2], %s66
      %73 = vst [vmem:[%s72] sm:$0x1] %v71
      %s74 = scalar_lea.vmem [#allocation10], %s69
      %v75 = vld [vmem:[%s74] sm:$0x1]
      %s76 = scalar_lea.vmem [#allocation3], %s66
      %77 = vst [vmem:[%s76] sm:$0x1] %v75
      %s78 = sadd.s32 %s66, 1
      %s79 = sadd.s32 %s59, %s78
      %s80 = sld [smem:[#allocation5 + %s79]]
      %s81 = sld [smem:[#allocation6 + %s79]]
      %s82 = scalar_lea.vmem [#allocation7], %s80
      %v83 = vld [vmem:[%s82] sm:$0x1]
      %s84 = scalar_lea.vmem [#allocation2], %s78
      %85 = vst [vmem:[%s84] sm:$0x1] %v83
      %s86 = scalar_lea.vmem [#allocation10], %s81
      %v87 = vld [vmem:[%s86] sm:$0x1]
      %s88 = scalar_lea.vmem [#allocation3], %s78
      %89 = vst [vmem:[%s88] sm:$0x1] %v87
      %s90 = sadd.s32 %s66, 2
      %s91 = sadd.s32 %s59, %s90
      %s92 = sld [smem:[#allocation5 + %s91]]
      %s93 = sld [smem:[#allocation6 + %s91]]
      %s94 = scalar_lea.vmem [#allocation7], %s92
      %v95 = vld [vmem:[%s94] sm:$0x1]
      %s96 = scalar_lea.vmem [#allocation2], %s90
      %97 = vst [vmem:[%s96] sm:$0x1] %v95
      %s98 = scalar_lea.vmem [#allocation10], %s93
      %v99 = vld [vmem:[%s98] sm:$0x1]
      %s100 = scalar_lea.vmem [#allocation3], %s90
      %101 = vst [vmem:[%s100] sm:$0x1] %v99
      %s102 = sadd.s32 %s66, 3
      %s103 = sadd.s32 %s59, %s102
      %s104 = sld [smem:[#allocation5 + %s103]]
      %s105 = sld [smem:[#allocation6 + %s103]]
      %s106 = scalar_lea.vmem [#allocation7], %s104
      %v107 = vld [vmem:[%s106] sm:$0x1]
      %s108 = scalar_lea.vmem [#allocation2], %s102
      %109 = vst [vmem:[%s108] sm:$0x1] %v107
      %s110 = scalar_lea.vmem [#allocation10], %s105
      %v111 = vld [vmem:[%s110] sm:$0x1]
      %s112 = scalar_lea.vmem [#allocation3], %s102
      %113 = vst [vmem:[%s112] sm:$0x1] %v111
      %s114 = sadd.s32 %s66, 4
      %s115 = sadd.s32 %s59, %s114
      %s116 = sld [smem:[#allocation5 + %s115]]
      %s117 = sld [smem:[#allocation6 + %s115]]
      %s118 = scalar_lea.vmem [#allocation7], %s116
      %v119 = vld [vmem:[%s118] sm:$0x1]
      %s120 = scalar_lea.vmem [#allocation2], %s114
      %121 = vst [vmem:[%s120] sm:$0x1] %v119
      %s122 = scalar_lea.vmem [#allocation10], %s117
      %v123 = vld [vmem:[%s122] sm:$0x1]
      %s124 = scalar_lea.vmem [#allocation3], %s114
      %125 = vst [vmem:[%s124] sm:$0x1] %v123
      %s126 = sadd.s32 %s66, 5
      %s127 = sadd.s32 %s59, %s126
      %s128 = sld [smem:[#allocation5 + %s127]]
      %s129 = sld [smem:[#allocation6 + %s127]]
      %s130 = scalar_lea.vmem [#allocation7], %s128
      %v131 = vld [vmem:[%s130] sm:$0x1]
      %s132 = scalar_lea.vmem [#allocation2], %s126
      %133 = vst [vmem:[%s132] sm:$0x1] %v131
      %s134 = scalar_lea.vmem [#allocation10], %s129
      %v135 = vld [vmem:[%s134] sm:$0x1]
      %s136 = scalar_lea.vmem [#allocation3], %s126
      %137 = vst [vmem:[%s136] sm:$0x1] %v135
      %s138 = sadd.s32 %s66, 6
      %s139 = sadd.s32 %s59, %s138
      %s140 = sld [smem:[#allocation5 + %s139]]
      %s141 = sld [smem:[#allocation6 + %s139]]
      %s142 = scalar_lea.vmem [#allocation7], %s140
      %v143 = vld [vmem:[%s142] sm:$0x1]
      %s144 = scalar_lea.vmem [#allocation2], %s138
      %145 = vst [vmem:[%s144] sm:$0x1] %v143
      %s146 = scalar_lea.vmem [#allocation10], %s141
      %v147 = vld [vmem:[%s146] sm:$0x1]
      %s148 = scalar_lea.vmem [#allocation3], %s138
      %149 = vst [vmem:[%s148] sm:$0x1] %v147
      %s150 = sadd.s32 %s66, 7
      %s151 = sadd.s32 %s59, %s150
      %s152 = sld [smem:[#allocation5 + %s151]]
      %s153 = sld [smem:[#allocation6 + %s151]]
      %s154 = scalar_lea.vmem [#allocation7], %s152
      %v155 = vld [vmem:[%s154] sm:$0x1]
      %s156 = scalar_lea.vmem [#allocation2], %s150
      %157 = vst [vmem:[%s156] sm:$0x1] %v155
      %s158 = scalar_lea.vmem [#allocation10], %s153
      %v159 = vld [vmem:[%s158] sm:$0x1]
      %s160 = scalar_lea.vmem [#allocation3], %s150
      %161 = vst [vmem:[%s160] sm:$0x1] %v159
    $region22: #{tpu_custom_call.1} parent=1 // loop_footer
      %s65 = sadd.s32 1, %s61
    $region23: #{tpu_custom_call.1} parent=1 // loop_footer_branch
      %60 = sbr.rel target = $region19
    $region24: #{tpu_custom_call.1} parent=1 // loop_exit
      _
    %v162 = vld [vmem:[#allocation2] sm:$0xff]
    %v163 = vld [vmem:[#allocation2 + $0x8] sm:$0xff]
    %v164 = vld [vmem:[#allocation2 + $0x10] sm:$0xff]
    %v165 = vld [vmem:[#allocation2 + $0x18] sm:$0xff]
    %v166 = vld [vmem:[#allocation2 + $0x20] sm:$0xff]
    %v167 = vld [vmem:[#allocation2 + $0x28] sm:$0xff]
    %v168 = vld [vmem:[#allocation2 + $0x30] sm:$0xff]
    %v169 = vld [vmem:[#allocation2 + $0x38] sm:$0xff]
    %v170 = vld [vmem:[#allocation2 + $0x40] sm:$0xff]
    %v171 = vld [vmem:[#allocation2 + $0x48] sm:$0xff]
    %v172 = vld [vmem:[#allocation2 + $0x50] sm:$0xff]
    %v173 = vld [vmem:[#allocation2 + $0x58] sm:$0xff]
    %v174 = vld [vmem:[#allocation2 + $0x60] sm:$0xff]
    %v175 = vld [vmem:[#allocation2 + $0x68] sm:$0xff]
    %v176 = vld [vmem:[#allocation2 + $0x70] sm:$0xff]
    %v177 = vld [vmem:[#allocation2 + $0x78] sm:$0xff]
    %v178 = vld [vmem:[#allocation3] sm:$0xff]
    %v179 = vld [vmem:[#allocation3 + $0x8] sm:$0xff]
    %v180 = vld [vmem:[#allocation3 + $0x10] sm:$0xff]
    %v181 = vld [vmem:[#allocation3 + $0x18] sm:$0xff]
    %v182 = vld [vmem:[#allocation3 + $0x20] sm:$0xff]
    %v183 = vld [vmem:[#allocation3 + $0x28] sm:$0xff]
    %v184 = vld [vmem:[#allocation3 + $0x30] sm:$0xff]
    %v185 = vld [vmem:[#allocation3 + $0x38] sm:$0xff]
    %v186 = vld [vmem:[#allocation3 + $0x40] sm:$0xff]
    %v187 = vld [vmem:[#allocation3 + $0x48] sm:$0xff]
    %v188 = vld [vmem:[#allocation3 + $0x50] sm:$0xff]
    %v189 = vld [vmem:[#allocation3 + $0x58] sm:$0xff]
    %v190 = vld [vmem:[#allocation3 + $0x60] sm:$0xff]
    %v191 = vld [vmem:[#allocation3 + $0x68] sm:$0xff]
    %v192 = vld [vmem:[#allocation3 + $0x70] sm:$0xff]
    %v193 = vld [vmem:[#allocation3 + $0x78] sm:$0xff]
    %v194 = vmul.f32 %v162, %v178
    %v195 = vmul.f32 %v163, %v179
    %v196 = vmul.f32 %v164, %v180
    %v197 = vmul.f32 %v165, %v181
    %v198 = vmul.f32 %v166, %v182
    %v199 = vmul.f32 %v167, %v183
    %v200 = vmul.f32 %v168, %v184
    %v201 = vmul.f32 %v169, %v185
    %v202 = vmul.f32 %v170, %v186
    %v203 = vmul.f32 %v171, %v187
    %v204 = vmul.f32 %v172, %v188
    %v205 = vmul.f32 %v173, %v189
    %v206 = vmul.f32 %v174, %v190
    %v207 = vmul.f32 %v175, %v191
    %v208 = vmul.f32 %v176, %v192
    %v209 = vmul.f32 %v177, %v193
    %210 = vmatpush.xpose.msra.mxu0 %v209
    %211 = vmatpush.xpose.msra.mxu0 %v208
    %212 = vmatpush.xpose.msra.mxu0 %v207
    %213 = vmatpush.xpose.msra.mxu0 %v206
    %214 = vmatpush.xpose.msra.mxu0 %v205
    %215 = vmatpush.xpose.msra.mxu0 %v204
    %216 = vmatpush.xpose.msra.mxu0 %v203
    %217 = vmatpush.xpose.msra.mxu0 %v202
    %218 = vmatpush.xpose.msra.mxu0 %v201
    %219 = vmatpush.xpose.msra.mxu0 %v200
    %220 = vmatpush.xpose.msra.mxu0 %v199
    %221 = vmatpush.xpose.msra.mxu0 %v198
    %222 = vmatpush.xpose.msra.mxu0 %v197
    %223 = vmatpush.xpose.msra.mxu0 %v196
    %224 = vmatpush.xpose.msra.mxu0 %v195
    %225 = vmatpush.xpose.msra.mxu0 %v194
    %226 = vmatmul.f32.gmra.mxu0 1.0
    %v227 = vpop.f32.mrf.mxu0
    %v228 = vadd.f32 0.0, %v227
    %229 = vdwg.mxu0
    %230 = vst [vmem:[#allocation12] sm:$0x1] %v228
    // Predicated region
    $region25: #{tpu_custom_call.1} parent=1 // pred_check
      _
    $region26: #{tpu_custom_call.1} parent=1 // pred_check_branch
      %232 = sbr.rel (0) target = $region28
    $region27: #{tpu_custom_call.1} parent=1 // pred_region
      %234 = vsyncadd [#allocation9], 0
      %s236 = sshll.u32 [#allocation12], 4
      %s237 = int_to_ptr.vmem [resolvable:$true] %s236
      %s238 = sshll.u32 %s4, 4
      %s239 = int_to_ptr.hbm [resolvable:$true] %s238
      %241 = dma.vmem_to_hbm [thread:$0]  %s237, 16, %s239, [#allocation9]
    $region28: #{tpu_custom_call.1} parent=1 // pred_fallthru
      _
    // Predicated region
    $region29: #{tpu_custom_call.1} parent=1 // pred_check
      _
    $region30: #{tpu_custom_call.1} parent=1 // pred_check_branch
      %243 = sbr.rel (0) target = $region32
    $region31: #{tpu_custom_call.1} parent=1 // pred_region
      %245 = dma.done [#allocation9], 16
    $region32: #{tpu_custom_call.1} parent=1 // pred_fallthru
      _
    %246 = vsyncpa [#allocation8], 1
    %247 = vsyncpa [#allocation11], 1
    %248 = vsyncpa [#allocation9], 1

</llo_original>
